<compile_context>
chip_gen: v5e
topology: v5e:2x2
jax: 0.10.0
libtpu: 0.0.40
codegen_flags: <defaults>
</compile_context>

<pallas_src>
import functools

import numpy as np
import jax
import jax.numpy as jnp
from jax import lax
from jax.experimental import pallas as pl
from jax.experimental.pallas import tpu as pltpu


def _round_up(x, m):
    return ((x + m - 1) // m) * m


# --------------------------------------------------------------------------- #
# Kernels
# --------------------------------------------------------------------------- #
def _chol_kernel_fused(x_ref, w_ref, b_ref, s_exp_ref, out_ref, *, dsq):
    """Fused path (D*D + D <= 128, PAD == 128).

    x_ref:     (TB, In)    activations (batch tile)
    w_ref:     (PAD, In)   padded Linear weight; rows [0, Out) = W,
                           rows [dsq, dsq+D) = W[:D] (duplicate for raw log-diag)
    b_ref:     (1, PAD)    padded bias with the same duplication
    s_exp_ref: (PAD, PAD)  one-hot scatter: exp(dense) lanes -> flat-L lanes
    out_ref:   (TB, PAD)   lane-dense slab [flat L (dsq) | log_diag (D) | 0 pad]
    """
    # dense = x @ W_pad.T + b_pad, contracting over In (MXU, full f32 precision).
    dense = lax.dot_general(
        x_ref[...], w_ref[...],
        dimension_numbers=(((1,), (1,)), ((), ())),
        precision=lax.Precision.HIGHEST,
        preferred_element_type=jnp.float32,
    ) + b_ref[...]                                   # (TB, PAD) f32

    e = jnp.exp(dense)                               # EUP

    # One-hot scatter: diag + strictly-lower L entries drawn from e; the
    # strictly-upper flat-L lanes and all lanes >= dsq get zero contribution.
    # HIGHEST precision makes the placement bit-exact (one-hot weights).
    slab = jnp.dot(e, s_exp_ref[...],
                   precision=lax.Precision.HIGHEST,
                   preferred_element_type=jnp.float32)

    # The raw log_diag already sits at lanes [dsq, dsq+D) of `dense` thanks to
    # the duplicated weight/bias rows; lanes >= dsq+D of dense are exactly 0,
    # so a single lane compare/select merges it — pure VPU, no second MXU pass.
    lane = lax.broadcasted_iota(jnp.int32, dense.shape, 1)
    slab = slab + jnp.where(lane >= dsq, dense, 0.0)

    out_ref[...] = slab.astype(out_ref.dtype)        # one unmasked lane-dense store


def _chol_kernel_two_matmul(x_ref, w_ref, b_ref, s_exp_ref, s_raw_ref, out_ref):
    """Fallback path for D*D + D > 128 (PAD > 128): two one-hot scatter matmuls."""
    dense = lax.dot_general(
        x_ref[...], w_ref[...],
        dimension_numbers=(((1,), (1,)), ((), ())),
        precision=lax.Precision.HIGHEST,
        preferred_element_type=jnp.float32,
    ) + b_ref[...]                                   # (TB, Out) f32
    e = jnp.exp(dense)
    slab = jnp.dot(e, s_exp_ref[...],
                   precision=lax.Precision.HIGHEST,
                   preferred_element_type=jnp.float32)
    slab = slab + jnp.dot(dense, s_raw_ref[...],
                          precision=lax.Precision.HIGHEST,
                          preferred_element_type=jnp.float32)
    out_ref[...] = slab.astype(out_ref.dtype)


# --------------------------------------------------------------------------- #
# Scatter-matrix constructors
# --------------------------------------------------------------------------- #
def _make_exp_scatter(D, pad):
    """(PAD, PAD) one-hot: exp(dense) lane k -> flat L position (row-major)."""
    s = np.zeros((pad, pad), dtype=np.float32)
    for i in range(D):
        s[i, i * D + i] = 1.0                         # diagonal of L
    lii, ljj = np.tril_indices(D, k=-1)
    for m, (i, j) in enumerate(zip(lii, ljj)):
        s[D + m, i * D + j] = 1.0                     # strictly-lower entries
    return jnp.asarray(s)


def _make_scatter_matrices(D, out_features, pad):
    """Fallback (D > 10): S_exp (Out, PAD) for exp'd L entries, S_raw (Out, PAD)
    for raw log_diag lanes. O(D^4) memory — only for moderate D."""
    s_exp = np.zeros((out_features, pad), dtype=np.float32)
    s_raw = np.zeros((out_features, pad), dtype=np.float32)
    for i in range(D):
        s_exp[i, i * D + i] = 1.0
        s_raw[i, D * D + i] = 1.0
    lii, ljj = np.tril_indices(D, k=-1)
    for m, (i, j) in enumerate(zip(lii, ljj)):
        s_exp[D + m, i * D + j] = 1.0
    return jnp.asarray(s_exp), jnp.asarray(s_raw)


# --------------------------------------------------------------------------- #
# Wrapper
# --------------------------------------------------------------------------- #
def chol_linear_forward(x, weight, bias, diag_size, *,
                        batch_tile=None, out_dtype=jnp.float32):
    """x: (B, In) f32; weight: (Out, In) f32 (PyTorch layout); bias: (Out,) f32.
    Returns (chol_trils (B, D, D), log_diags (B, D))."""
    B, In = x.shape
    Out, In_w = weight.shape
    D = diag_size
    dsq = D * D
    assert In_w == In
    assert Out == D + (D * D - D) // 2

    # Lane-dense padded slab width: [flat L (D*D) | log_diag (D) | pad] -> x128.
    pad = _round_up(dsq + D, 128)

    # ---- batch tiling ------------------------------------------------------
    # Per-step VMEM at In=32: (x + out) * 2 buffers ~ 1.3 KiB/row -> ~2.6 MiB at
    # TB=2048; well inside every generation's scoped VMEM.
    if batch_tile is None:
        batch_tile = 2048
    tb = min(batch_tile, _round_up(B, 8))
    tb = max(8, (tb // 8) * 8)
    # Keep >= 2 grid steps when possible so ("parallel",) can split the batch
    # axis across both TensorCores on v7x; harmless on v5e/v6e (single TC).
    if pl.cdiv(B, tb) < 2 and B > 8:
        tb = max(8, _round_up(pl.cdiv(B, 2), 8))
    grid = (pl.cdiv(B, tb),)   # ragged last block: OOB rows masked by Pallas

    weight = weight.astype(jnp.float32)
    bias = bias.astype(jnp.float32)

    if dsq + D <= 128:
        # Fused path: pad W/b to PAD output lanes and duplicate rows 0..D-1 at
        # rows dsq..dsq+D-1 (Out <= dsq always, so no overlap). These are tiny,
        # one-time constant transforms of the resident operands.
        w_pad = jnp.zeros((pad, In), jnp.float32)
        w_pad = w_pad.at[:Out].set(weight).at[dsq:dsq + D].set(weight[:D])
        b_pad = jnp.zeros((1, pad), jnp.float32)
        b_pad = b_pad.at[0, :Out].set(bias).at[0, dsq:dsq + D].set(bias[:D])
        s_exp = _make_exp_scatter(D, pad)

        kernel = functools.partial(_chol_kernel_fused, dsq=dsq)
        in_specs = [
            pl.BlockSpec((tb, In), lambda i: (i, 0)),     # x: tiled over batch
            pl.BlockSpec((pad, In), lambda i: (0, 0)),    # W_pad: resident
            pl.BlockSpec((1, pad), lambda i: (0, 0)),     # b_pad: resident
            pl.BlockSpec((pad, pad), lambda i: (0, 0)),   # S_exp: resident
        ]
        operands = (x, w_pad, b_pad, s_exp)
    else:
        # D > 10: keep the two one-hot matmuls. NOTE: these matrices are
        # O(D^4) and double-buffered by default; for large D switch to an
        # in-kernel iota-mask/select or manual DMA scatter and set
        # vmem_limit_bytes explicitly (tightest on v7x's 64 MiB VMEM).
        s_exp, s_raw = _make_scatter_matrices(D, Out, pad)
        kernel = _chol_kernel_two_matmul
        in_specs = [
            pl.BlockSpec((tb, In), lambda i: (i, 0)),
            pl.BlockSpec((Out, In), lambda i: (0, 0)),
            pl.BlockSpec((1, Out), lambda i: (0, 0)),
            pl.BlockSpec((Out, pad), lambda i: (0, 0)),
            pl.BlockSpec((Out, pad), lambda i: (0, 0)),
        ]
        operands = (x, weight, bias.reshape(1, Out), s_exp, s_raw)

    slab = pl.pallas_call(
        kernel,
        out_shape=jax.ShapeDtypeStruct((B, pad), out_dtype),
        grid=grid,
        in_specs=in_specs,
        out_specs=pl.BlockSpec((tb, pad), lambda i: (i, 0)),
        compiler_params=pltpu.CompilerParams(
            dimension_semantics=("parallel",)),
    )(*operands)

    # NOTE: a fused consumer could take `slab` directly (lane-dense layout
    # [flat L | log_diag | pad]) and skip the slice/reshape copies below.
    chol_trils = slab[:, :dsq].reshape(B, D, D)
    log_diags = slab[:, dsq:dsq + D]
    return chol_trils, log_diags


# --------------------------------------------------------------------------- #
# Reference + self-test
# --------------------------------------------------------------------------- #
def _reference(x, weight, bias, diag_size):
    D = diag_size
    dense = jnp.dot(x, weight.T, precision=lax.Precision.HIGHEST) + bias
    log_diag = dense[:, :D]
    e = jnp.exp(dense)
    B = x.shape[0]
    L = jnp.zeros((B, D, D), jnp.float32)
    lii, ljj = np.tril_indices(D, k=-1)
    dii, djj = np.diag_indices(D)
    L = L.at[:, lii, ljj].set(e[:, D:])
    L = L.at[:, dii, djj].set(e[:, :D])
    return L, log_diag


if __name__ == "__main__":
    # Small shapes consistent with the module: input_size=32, output_size(D)=8.
    # B=12 exercises the ragged-last-block path (tb=8, grid=2, rows 12..15 masked).
    B, In, D = 12, 32, 8
    Out = D + (D * D - D) // 2           # 36

    key = jax.random.PRNGKey(0)
    kx, kw, kb = jax.random.split(key, 3)
    x = jax.random.normal(kx, (B, In), jnp.float32)
    # deterministic init mimicking torch.nn.Linear default: U(-1/sqrt(In), 1/sqrt(In))
    bound = 1.0 / np.sqrt(In)
    weight = jax.random.uniform(kw, (Out, In), jnp.float32, -bound, bound)
    bias = jax.random.uniform(kb, (Out,), jnp.float32, -bound, bound)

    chol_trils, log_diags = chol_linear_forward(x, weight, bias, D)
    jax.block_until_ready((chol_trils, log_diags))

    ref_L, ref_ld = _reference(x, weight, bias, D)
    np.testing.assert_allclose(np.asarray(chol_trils), np.asarray(ref_L),
                               rtol=1e-3, atol=1e-3)
    np.testing.assert_allclose(np.asarray(log_diags), np.asarray(ref_ld),
                               rtol=1e-3, atol=1e-3)

    print("KERNEL_OK")
</pallas_src>

<mosaic_0001>
module attributes {stable_mosaic.version = 11 : i64} {
  func.func @_chol_kernel_fused(%arg0: i32, %arg1: memref<8x32xf32, #tpu.memory_space<vmem>>, %arg2: memref<128x32xf32, #tpu.memory_space<vmem>>, %arg3: memref<1x128xf32, #tpu.memory_space<vmem>>, %arg4: memref<128x128xf32, #tpu.memory_space<vmem>>, %arg5: memref<8x128xf32, #tpu.memory_space<vmem>>) attributes {dimension_semantics = [#tpu.dimension_semantics<parallel>], iteration_bounds = array<i64: 2>, scalar_prefetch = 0 : i64, scratch_operands = 0 : i64, tpu.core_type = #tpu.core_type<tc>, window_params = [{transform_indices = @transform_0, window_bounds = array<i64: 8, 32>}, {pipeline_mode = #tpu.pipeline_mode<synchronous>, transform_indices = @transform_1, window_bounds = array<i64: 128, 32>}, {pipeline_mode = #tpu.pipeline_mode<synchronous>, transform_indices = @transform_2, window_bounds = array<i64: 1, 128>}, {pipeline_mode = #tpu.pipeline_mode<synchronous>, transform_indices = @transform_3, window_bounds = array<i64: 128, 128>}, {transform_indices = @transform_4, window_bounds = array<i64: 8, 128>}]} {
    %c0 = arith.constant 0 : index
    %c0_0 = arith.constant 0 : index
    %0 = vector.load %arg1[%c0, %c0_0] : memref<8x32xf32, #tpu.memory_space<vmem>>, vector<8x32xf32>
    %c0_1 = arith.constant 0 : index
    %c0_2 = arith.constant 0 : index
    %1 = vector.load %arg2[%c0_1, %c0_2] : memref<128x32xf32, #tpu.memory_space<vmem>>, vector<128x32xf32>
    %cst = arith.constant dense<0.000000e+00> : vector<8x128xf32>
    %2 = tpu.matmul %0, %1, %cst {dimension_numbers = #tpu.dot_dimension_numbers<[1], [1], [0], [0], [0, 0, 1, 0], [], []>, precision = #tpu.contract_precision<fp32>} : vector<8x32xf32>, vector<128x32xf32>, vector<8x128xf32> -> vector<8x128xf32>
    %c0_3 = arith.constant 0 : index
    %c0_4 = arith.constant 0 : index
    %3 = vector.load %arg3[%c0_3, %c0_4] : memref<1x128xf32, #tpu.memory_space<vmem>>, vector<1x128xf32>
    %4 = vector.broadcast %3 : vector<1x128xf32> to vector<8x128xf32>
    %5 = arith.addf %2, %4 : vector<8x128xf32>
    %6 = math.exp %5 : vector<8x128xf32>
    %c0_5 = arith.constant 0 : index
    %c0_6 = arith.constant 0 : index
    %7 = vector.load %arg4[%c0_5, %c0_6] : memref<128x128xf32, #tpu.memory_space<vmem>>, vector<128x128xf32>
    %cst_7 = arith.constant dense<0.000000e+00> : vector<8x128xf32>
    %8 = tpu.matmul %6, %7, %cst_7 {dimension_numbers = #tpu.dot_dimension_numbers<[1], [0], [0], [1], [0, 0, 1, 1], [], []>, precision = #tpu.contract_precision<fp32>} : vector<8x128xf32>, vector<128x128xf32>, vector<8x128xf32> -> vector<8x128xf32>
    %9 = tpu.iota {dimensions = array<i32: 1>} : vector<8x128xi32>
    %c64_i32 = arith.constant 64 : i32
    %10 = vector.broadcast %c64_i32 : i32 to vector<8x128xi32>
    %11 = arith.cmpi sge, %9, %10 : vector<8x128xi32>
    %cst_8 = arith.constant 0.000000e+00 : f32
    %12 = vector.broadcast %cst_8 : f32 to vector<8x128xf32>
    %13 = arith.select %11, %5, %12 : vector<8x128xi1>, vector<8x128xf32>
    %14 = arith.addf %8, %13 : vector<8x128xf32>
    %c0_9 = arith.constant 0 : index
    %c0_10 = arith.constant 0 : index
    %15 = vector.load %arg5[%c0_9, %c0_10] : memref<8x128xf32, #tpu.memory_space<vmem>>, vector<8x128xf32>
    tpu.vector_store %arg5[%c0_9, %c0_10], %14 {strides = array<i32>} : memref<8x128xf32, #tpu.memory_space<vmem>>, vector<8x128xf32>,
    return
  }
  func.func @transform_0(%arg0: i32) -> (i32, i32) {
    %c0_i32 = arith.constant 0 : i32
    %c0_i32_0 = arith.constant 0 : i32
    return %arg0, %c0_i32 : i32, i32
  }
  func.func @transform_1(%arg0: i32) -> (i32, i32) {
    %c0_i32 = arith.constant 0 : i32
    %c0_i32_0 = arith.constant 0 : i32
    %c0_i32_1 = arith.constant 0 : i32
    return %c0_i32, %c0_i32_0 : i32, i32
  }
  func.func @transform_2(%arg0: i32) -> (i32, i32) {
    %c0_i32 = arith.constant 0 : i32
    %c0_i32_0 = arith.constant 0 : i32
    %c0_i32_1 = arith.constant 0 : i32
    return %c0_i32, %c0_i32_0 : i32, i32
  }
  func.func @transform_3(%arg0: i32) -> (i32, i32) {
    %c0_i32 = arith.constant 0 : i32
    %c0_i32_0 = arith.constant 0 : i32
    %c0_i32_1 = arith.constant 0 : i32
    return %c0_i32, %c0_i32_0 : i32, i32
  }
  func.func @transform_4(%arg0: i32) -> (i32, i32) {
    %c0_i32 = arith.constant 0 : i32
    %c0_i32_0 = arith.constant 0 : i32
    return %arg0, %c0_i32 : i32, i32
  }
}

</mosaic_0001>

<llo_original>
// kernel: tpu_custom_call.1
$region0: #{tpu_custom_call.1}
  #allocation0 [shape = 'u32[]', space=smem, size = 0x4, offset = 0x4, fixed_abs, tag = 'smem constant byte address 0x4 - core index']
  #allocation1 [shape = 'u32[72,128]{1,0:T(1,128)}', space=vmem, size = 0x9000, scoped, tag = 'internal scratch']
  %s0 = inlined_call_operand.vmem [shape: f32[12,32], index: 0, kind: input, shape index: {}]
  %s1 = inlined_call_operand.vmem [shape: f32[128,32], index: 1, kind: input, shape index: {}]
  %s2 = inlined_call_operand.vmem [shape: f32[1,128], index: 2, kind: input, shape index: {}]
  %s3 = inlined_call_operand.vmem [shape: f32[128,128], index: 3, kind: input, shape index: {}]
  %s4 = inlined_call_operand.hbm [shape: f32[12,128], index: 4, kind: output, shape index: {}]
  %s5 = sld [smem:[#allocation0]]
  $region49: #{tpu_custom_call.1} parent=0
    _
  %s7 = ssub.s32 1, %s5
  %s8 = scalar_select 0, %s7, %s5
  $region1: #{tpu_custom_call.1} parent=0
    #allocation2 [shape = 'u8[8192]{0}', space=vmem, size = 0x2000, scoped, tag = 'output window, operand 0']
    #allocation3 [shape = 's32[2]{0}', space=sflag, size = 0x8, scoped, tag = 'scoped memory for tpu_custom_call.1']
    %9 = vsyncpa [#allocation3], 0
    %s10 = scalar_lea.sflag [#allocation3], 1
    %11 = vsyncpa %s10, 0
    loop: start=0, step=1, limit=4
    $region2: #{tpu_custom_call.1} parent=1 // loop_pre_header
      _
    $region3: #{tpu_custom_call.1} parent=1 // loop_header
      %s13 = sphi 0, %s17
      %p14 = scmp.ge.s32.totalorder %s13, 4
      %s23 = sphi 0, %s25
      %s26 = sphi 0, %s23
      %s27 = sphi 0, %s26
      %s43 = sphi 0, %s27
      %s47 = sphi 0, %s47
      %s49 = sphi 0, %s47
      %s50 = sphi 0, %s49
      %s64 = sphi 0, %s50
      %s68 = sphi 0, %s68
      %s70 = sphi 0, %s68
      %s71 = sphi 0, %s70
      %s85 = sphi 0, %s71
      %s89 = sphi 0, %s89
      %s91 = sphi 0, %s89
      %s92 = sphi 0, %s91
      %s106 = sphi 0, %s92
      %s112 = sphi 0, %s114
      %s115 = sphi 0, %s112
      %s116 = sphi 0, %s115
      %s132 = sphi 0, %s116
    $region4: #{tpu_custom_call.1} parent=1 // loop_header_branch
      %16 = sbr.rel (%p14) target = $region8
    $region5: #{tpu_custom_call.1} parent=1 // loop_body
      %s18 = ssub.s32 %s13, 1
      %s19 = ssub.s32 %s13, 2
      %s20 = sadd.s32 %s13, 1
      %s21 = ssub.s32 %s13, %s20
      %p22 = scmp.eq.s32.totalorder %s21, 0
      %s24 = sadd.s32 %s23, 1
      %s25 = scalar_select %p22, %s23, %s24
      %p28 = pneg %p22
      %p29 = scmp.eq.s32.totalorder %s13, 1
      %p30 = por %p28, %p29
      %p31 = scmp.ne.s32.totalorder %s23, %s26
      %p32 = scmp.eq.s32.totalorder %s13, 0
      %p33 = por %p31, %p32
      %p34 = scmp.ne.s32.totalorder %s23, %s26
      %p35 = scmp.eq.s32.totalorder %s18, 1
      %p36 = por %p34, %p35
      %p37 = scmp.ne.s32.totalorder %s26, %s27
      %p38 = scmp.eq.s32.totalorder %s18, 0
      %p39 = por %p37, %p38
      %p40 = scmp.ne.s32.totalorder %s26, %s27
      %p41 = scmp.eq.s32.totalorder %s19, 1
      %p42 = por %p40, %p41
      %p44 = scmp.ne.s32.totalorder %s27, %s43
      %p45 = scmp.eq.s32.totalorder %s19, 0
      %p46 = por %p44, %p45
      %s48 = sadd.s32 %s47, 1
      %p51 = scmp.eq.s32.totalorder %s13, 1
      %p52 = scmp.ne.s32.totalorder %s47, %s49
      %p53 = scmp.eq.s32.totalorder %s13, 0
      %p54 = por %p52, %p53
      %p55 = scmp.ne.s32.totalorder %s47, %s49
      %p56 = scmp.eq.s32.totalorder %s18, 1
      %p57 = por %p55, %p56
      %p58 = scmp.ne.s32.totalorder %s49, %s50
      %p59 = scmp.eq.s32.totalorder %s18, 0
      %p60 = por %p58, %p59
      %p61 = scmp.ne.s32.totalorder %s49, %s50
      %p62 = scmp.eq.s32.totalorder %s19, 1
      %p63 = por %p61, %p62
      %p65 = scmp.ne.s32.totalorder %s50, %s64
      %p66 = scmp.eq.s32.totalorder %s19, 0
      %p67 = por %p65, %p66
      %s69 = sadd.s32 %s68, 1
      %p72 = scmp.eq.s32.totalorder %s13, 1
      %p73 = scmp.ne.s32.totalorder %s68, %s70
      %p74 = scmp.eq.s32.totalorder %s13, 0
      %p75 = por %p73, %p74
      %p76 = scmp.ne.s32.totalorder %s68, %s70
      %p77 = scmp.eq.s32.totalorder %s18, 1
      %p78 = por %p76, %p77
      %p79 = scmp.ne.s32.totalorder %s70, %s71
      %p80 = scmp.eq.s32.totalorder %s18, 0
      %p81 = por %p79, %p80
      %p82 = scmp.ne.s32.totalorder %s70, %s71
      %p83 = scmp.eq.s32.totalorder %s19, 1
      %p84 = por %p82, %p83
      %p86 = scmp.ne.s32.totalorder %s71, %s85
      %p87 = scmp.eq.s32.totalorder %s19, 0
      %p88 = por %p86, %p87
      %s90 = sadd.s32 %s89, 1
      %p93 = scmp.eq.s32.totalorder %s13, 1
      %p94 = scmp.ne.s32.totalorder %s89, %s91
      %p95 = scmp.eq.s32.totalorder %s13, 0
      %p96 = por %p94, %p95
      %p97 = scmp.ne.s32.totalorder %s89, %s91
      %p98 = scmp.eq.s32.totalorder %s18, 1
      %p99 = por %p97, %p98
      %p100 = scmp.ne.s32.totalorder %s91, %s92
      %p101 = scmp.eq.s32.totalorder %s18, 0
      %p102 = por %p100, %p101
      %p103 = scmp.ne.s32.totalorder %s91, %s92
      %p104 = scmp.eq.s32.totalorder %s19, 1
      %p105 = por %p103, %p104
      %p107 = scmp.ne.s32.totalorder %s92, %s106
      %p108 = scmp.eq.s32.totalorder %s19, 0
      %p109 = por %p107, %p108
      %s110 = ssub.s32 %s13, %s20
      %p111 = scmp.eq.s32.totalorder %s110, 0
      %s113 = sadd.s32 %s112, 1
      %s114 = scalar_select %p111, %s112, %s113
      %p117 = pneg %p111
      %p118 = scmp.eq.s32.totalorder %s13, 1
      %p119 = por %p117, %p118
      %p120 = scmp.ne.s32.totalorder %s112, %s115
      %p121 = scmp.eq.s32.totalorder %s13, 0
      %p122 = por %p120, %p121
      %p123 = scmp.ne.s32.totalorder %s112, %s115
      %p124 = scmp.eq.s32.totalorder %s18, 1
      %p125 = por %p123, %p124
      %p126 = scmp.ne.s32.totalorder %s115, %s116
      %p127 = scmp.eq.s32.totalorder %s18, 0
      %p128 = por %p126, %p127
      %p129 = scmp.ne.s32.totalorder %s115, %s116
      %p130 = scmp.eq.s32.totalorder %s19, 1
      %p131 = por %p129, %p130
      %p133 = scmp.ne.s32.totalorder %s116, %s132
      %p134 = scmp.eq.s32.totalorder %s19, 0
      %p135 = por %p133, %p134
      %p136 = scmp.le.s32.totalorder 1, %s13
      %p137 = scmp.lt.s32.totalorder %s13, 3
      %p138 = pnand %p136, %p137
      %p139 = pneg %p138
      // Predicated region
      $region9: #{tpu_custom_call.1} parent=5 // pred_check
        _
      $region10: #{tpu_custom_call.1} parent=5 // pred_check_branch
        %141 = sbr.rel (%p138) target = $region12
      $region11: #{tpu_custom_call.1} parent=5 // pred_region
        %s142 = ssub.s32 %s13, 1
        // Predicated region
        $region13: #{tpu_custom_call.1} parent=11 // pred_check
          %p143 = pneg %p60
        $region14: #{tpu_custom_call.1} parent=11 // pred_check_branch
          %145 = sbr.rel (%p143) target = $region16
        $region15: #{tpu_custom_call.1} parent=11 // pred_region
          _
        $region16: #{tpu_custom_call.1} parent=11 // pred_fallthru
          _
        // Predicated region
        $region17: #{tpu_custom_call.1} parent=11 // pred_check
          %p146 = pneg %p81
        $region18: #{tpu_custom_call.1} parent=11 // pred_check_branch
          %148 = sbr.rel (%p146) target = $region20
        $region19: #{tpu_custom_call.1} parent=11 // pred_region
          _
        $region20: #{tpu_custom_call.1} parent=11 // pred_fallthru
          _
        // Predicated region
        $region21: #{tpu_custom_call.1} parent=11 // pred_check
          %p149 = pneg %p102
        $region22: #{tpu_custom_call.1} parent=11 // pred_check_branch
          %151 = sbr.rel (%p149) target = $region24
        $region23: #{tpu_custom_call.1} parent=11 // pred_region
          _
        $region24: #{tpu_custom_call.1} parent=11 // pred_fallthru
          _
      $region12: #{tpu_custom_call.1} parent=5 // pred_fallthru
        _
      %p152 = scmp.lt.s32.totalorder %s13, 2
      // Predicated region
      $region25: #{tpu_custom_call.1} parent=5 // pred_check
        %p153 = pneg %p152
      $region26: #{tpu_custom_call.1} parent=5 // pred_check_branch
        %155 = sbr.rel (%p153) target = $region28
      $region27: #{tpu_custom_call.1} parent=5 // pred_region
        // Predicated region
        $region29: #{tpu_custom_call.1} parent=27 // pred_check
          %p156 = pneg %p33
        $region30: #{tpu_custom_call.1} parent=27 // pred_check_branch
          %158 = sbr.rel (%p156) target = $region32
        $region31: #{tpu_custom_call.1} parent=27 // pred_region
          %p159 = scmp.lt.s32.totalorder %s13, 1
          %s160 = scalar_select %p159, %s13, 1
          %s161 = smul.addr %s160, 8
          %s162 = scalar_lea.vmem %s0, %s161
        $region32: #{tpu_custom_call.1} parent=27 // pred_fallthru
          _
      $region28: #{tpu_custom_call.1} parent=5 // pred_fallthru
        _
      %p163 = scmp.le.s32.totalorder 1, %s13
      %p164 = scmp.lt.s32.totalorder %s13, 3
      %p165 = pnand %p163, %p164
      %p166 = pneg %p165
      // Predicated region
      $region33: #{tpu_custom_call.1} parent=5 // pred_check
        _
      $region34: #{tpu_custom_call.1} parent=5 // pred_check_branch
        %168 = sbr.rel (%p165) target = $region36
      $region35: #{tpu_custom_call.1} parent=5 // pred_region
        %s169 = ssub.s32 %s13, 1
        %p170 = scmp.lt.s32.totalorder %s18, 1
        %s171 = scalar_select %p170, %s18, 1
        %s172 = smul.addr %s171, 8
        %s173 = scalar_lea.vmem %s0, %s172
        %p174 = pneg %p39
        %p175 = pneg %p36
        %p176 = pneg %p60
        %p177 = pneg %p57
        %p178 = pneg %p81
        %p179 = pneg %p78
        %p180 = pneg %p102
        %p181 = pneg %p99
        %p182 = pneg %p128
        %p183 = pneg %p125
        %s184 = sand.u32 %s115, 1
        %s185 = scalar_lea.sflag [#allocation3], %s184
        %s186 = sand.u32 %s115, 1
        %s187 = smul.addr %s186, 8
        %s188 = scalar_lea.vmem [#allocation2], %s187
        %p189 = scmp.lt.s32.totalorder %s18, 1
        %s190 = scalar_select %p189, %s18, 1
        %s191 = smul.addr %s190, 8
        %s192 = scalar_lea.vmem %s0, %s191
        %v193 = vld [vmem:[%s192] sm:$0xff]
        %v194 = vld [vmem:[%s1] sm:$0xff]
        %v195 = vld [vmem:[%s1 + $0x8] sm:$0xff]
        %v196 = vld [vmem:[%s1 + $0x10] sm:$0xff]
        %v197 = vld [vmem:[%s1 + $0x18] sm:$0xff]
        %v198 = vld [vmem:[%s1 + $0x20] sm:$0xff]
        %v199 = vld [vmem:[%s1 + $0x28] sm:$0xff]
        %v200 = vld [vmem:[%s1 + $0x30] sm:$0xff]
        %v201 = vld [vmem:[%s1 + $0x38] sm:$0xff]
        %v202 = vld [vmem:[%s1 + $0x40] sm:$0xff]
        %v203 = vld [vmem:[%s1 + $0x48] sm:$0xff]
        %v204 = vld [vmem:[%s1 + $0x50] sm:$0xff]
        %v205 = vld [vmem:[%s1 + $0x58] sm:$0xff]
        %v206 = vld [vmem:[%s1 + $0x60] sm:$0xff]
        %v207 = vld [vmem:[%s1 + $0x68] sm:$0xff]
        %v208 = vld [vmem:[%s1 + $0x70] sm:$0xff]
        %v209 = vld [vmem:[%s1 + $0x78] sm:$0xff]
        %v210 = vld [vmem:[%s2] sm:$0x1]
        %v212 = vperm.slane %v210, 0
        %vm214 = vcmask 261120
        %v216 = vsel %vm214, %v193, 0
        %v219 = vsel %vm214, %v194, 0
        %v222 = vsel %vm214, %v195, 0
        %v225 = vsel %vm214, %v196, 0
        %v228 = vsel %vm214, %v197, 0
        %v231 = vsel %vm214, %v198, 0
        %v234 = vsel %vm214, %v199, 0
        %v237 = vsel %vm214, %v200, 0
        %v240 = vsel %vm214, %v201, 0
        %v243 = vsel %vm214, %v202, 0
        %v246 = vsel %vm214, %v203, 0
        %v249 = vsel %vm214, %v204, 0
        %v252 = vsel %vm214, %v205, 0
        %v255 = vsel %vm214, %v206, 0
        %v258 = vsel %vm214, %v207, 0
        %v261 = vsel %vm214, %v208, 0
        %v264 = vsel %vm214, %v209, 0
        %v266 = vand.u32 %v264, 4294901760
        %267 = vmatpush.xpose.msra.mxu0 %v266
        %v268 = vand.u32 %v261, 4294901760
        %269 = vmatpush.xpose.msra.mxu0 %v268
        %v270 = vand.u32 %v258, 4294901760
        %271 = vmatpush.xpose.msra.mxu0 %v270
        %v272 = vand.u32 %v255, 4294901760
        %273 = vmatpush.xpose.msra.mxu0 %v272
        %v274 = vand.u32 %v252, 4294901760
        %275 = vmatpush.xpose.msra.mxu0 %v274
        %v276 = vand.u32 %v249, 4294901760
        %277 = vmatpush.xpose.msra.mxu0 %v276
        %v278 = vand.u32 %v246, 4294901760
        %279 = vmatpush.xpose.msra.mxu0 %v278
        %v280 = vand.u32 %v243, 4294901760
        %281 = vmatpush.xpose.msra.mxu0 %v280
        %v282 = vand.u32 %v240, 4294901760
        %283 = vmatpush.xpose.msra.mxu0 %v282
        %v284 = vand.u32 %v237, 4294901760
        %285 = vmatpush.xpose.msra.mxu0 %v284
        %v286 = vand.u32 %v234, 4294901760
        %287 = vmatpush.xpose.msra.mxu0 %v286
        %v288 = vand.u32 %v231, 4294901760
        %289 = vmatpush.xpose.msra.mxu0 %v288
        %v290 = vand.u32 %v228, 4294901760
        %291 = vmatpush.xpose.msra.mxu0 %v290
        %v292 = vand.u32 %v225, 4294901760
        %293 = vmatpush.xpose.msra.mxu0 %v292
        %v294 = vand.u32 %v222, 4294901760
        %295 = vmatpush.xpose.msra.mxu0 %v294
        %v296 = vand.u32 %v219, 4294901760
        %297 = vmatpush.xpose.msra.mxu0 %v296
        %v298 = vand.u32 %v216, 4294901760
        %v299 = vsub.f32 %v216, %v298
        %v300 = vand.u32 %v299, 4294901760
        %v301 = vsub.f32 %v299, %v300
        %v302 = vand.u32 %v301, 4294901760
        %303 = vmatmul.f32.gmra.mxu0 %v302
        %v304 = vpop.f32.mrf.mxu0
        %v305 = vadd.f32 %v212, %v304
        %306 = vdwg.mxu0
        %v307 = vand.u32 %v264, 4294901760
        %v308 = vsub.f32 %v264, %v307
        %v309 = vand.u32 %v308, 4294901760
        %v310 = vsub.f32 %v308, %v309
        %v311 = vand.u32 %v310, 4294901760
        %312 = vmatpush.xpose.msra.mxu0 %v311
        %v313 = vand.u32 %v261, 4294901760
        %v314 = vsub.f32 %v261, %v313
        %v315 = vand.u32 %v314, 4294901760
        %v316 = vsub.f32 %v314, %v315
        %v317 = vand.u32 %v316, 4294901760
        %318 = vmatpush.xpose.msra.mxu0 %v317
        %v319 = vand.u32 %v258, 4294901760
        %v320 = vsub.f32 %v258, %v319
        %v321 = vand.u32 %v320, 4294901760
        %v322 = vsub.f32 %v320, %v321
        %v323 = vand.u32 %v322, 4294901760
        %324 = vmatpush.xpose.msra.mxu0 %v323
        %v325 = vand.u32 %v255, 4294901760
        %v326 = vsub.f32 %v255, %v325
        %v327 = vand.u32 %v326, 4294901760
        %v328 = vsub.f32 %v326, %v327
        %v329 = vand.u32 %v328, 4294901760
        %330 = vmatpush.xpose.msra.mxu0 %v329
        %v331 = vand.u32 %v252, 4294901760
        %v332 = vsub.f32 %v252, %v331
        %v333 = vand.u32 %v332, 4294901760
        %v334 = vsub.f32 %v332, %v333
        %v335 = vand.u32 %v334, 4294901760
        %336 = vmatpush.xpose.msra.mxu0 %v335
        %v337 = vand.u32 %v249, 4294901760
        %v338 = vsub.f32 %v249, %v337
        %v339 = vand.u32 %v338, 4294901760
        %v340 = vsub.f32 %v338, %v339
        %v341 = vand.u32 %v340, 4294901760
        %342 = vmatpush.xpose.msra.mxu0 %v341
        %v343 = vand.u32 %v246, 4294901760
        %v344 = vsub.f32 %v246, %v343
        %v345 = vand.u32 %v344, 4294901760
        %v346 = vsub.f32 %v344, %v345
        %v347 = vand.u32 %v346, 4294901760
        %348 = vmatpush.xpose.msra.mxu0 %v347
        %v349 = vand.u32 %v243, 4294901760
        %v350 = vsub.f32 %v243, %v349
        %v351 = vand.u32 %v350, 4294901760
        %v352 = vsub.f32 %v350, %v351
        %v353 = vand.u32 %v352, 4294901760
        %354 = vmatpush.xpose.msra.mxu0 %v353
        %v355 = vand.u32 %v240, 4294901760
        %v356 = vsub.f32 %v240, %v355
        %v357 = vand.u32 %v356, 4294901760
        %v358 = vsub.f32 %v356, %v357
        %v359 = vand.u32 %v358, 4294901760
        %360 = vmatpush.xpose.msra.mxu0 %v359
        %v361 = vand.u32 %v237, 4294901760
        %v362 = vsub.f32 %v237, %v361
        %v363 = vand.u32 %v362, 4294901760
        %v364 = vsub.f32 %v362, %v363
        %v365 = vand.u32 %v364, 4294901760
        %366 = vmatpush.xpose.msra.mxu0 %v365
        %v367 = vand.u32 %v234, 4294901760
        %v368 = vsub.f32 %v234, %v367
        %v369 = vand.u32 %v368, 4294901760
        %v370 = vsub.f32 %v368, %v369
        %v371 = vand.u32 %v370, 4294901760
        %372 = vmatpush.xpose.msra.mxu0 %v371
        %v373 = vand.u32 %v231, 4294901760
        %v374 = vsub.f32 %v231, %v373
        %v375 = vand.u32 %v374, 4294901760
        %v376 = vsub.f32 %v374, %v375
        %v377 = vand.u32 %v376, 4294901760
        %378 = vmatpush.xpose.msra.mxu0 %v377
        %v379 = vand.u32 %v228, 4294901760
        %v380 = vsub.f32 %v228, %v379
        %v381 = vand.u32 %v380, 4294901760
        %v382 = vsub.f32 %v380, %v381
        %v383 = vand.u32 %v382, 4294901760
        %384 = vmatpush.xpose.msra.mxu0 %v383
        %v385 = vand.u32 %v225, 4294901760
        %v386 = vsub.f32 %v225, %v385
        %v387 = vand.u32 %v386, 4294901760
        %v388 = vsub.f32 %v386, %v387
        %v389 = vand.u32 %v388, 4294901760
        %390 = vmatpush.xpose.msra.mxu0 %v389
        %v391 = vand.u32 %v222, 4294901760
        %v392 = vsub.f32 %v222, %v391
        %v393 = vand.u32 %v392, 4294901760
        %v394 = vsub.f32 %v392, %v393
        %v395 = vand.u32 %v394, 4294901760
        %396 = vmatpush.xpose.msra.mxu0 %v395
        %v397 = vand.u32 %v219, 4294901760
        %v398 = vsub.f32 %v219, %v397
        %v399 = vand.u32 %v398, 4294901760
        %v400 = vsub.f32 %v398, %v399
        %v401 = vand.u32 %v400, 4294901760
        %402 = vmatpush.xpose.msra.mxu0 %v401
        %v403 = vand.u32 %v216, 4294901760
        %404 = vmatmul.f32.gmra.mxu0 %v403
        %v405 = vpop.f32.mrf.mxu0
        %v406 = vadd.f32 %v305, %v405
        %407 = vdwg.mxu0
        %v408 = vand.u32 %v264, 4294901760
        %v409 = vsub.f32 %v264, %v408
        %410 = vmatpush.xpose.msra.mxu0 %v409
        %v411 = vand.u32 %v261, 4294901760
        %v412 = vsub.f32 %v261, %v411
        %413 = vmatpush.xpose.msra.mxu0 %v412
        %v414 = vand.u32 %v258, 4294901760
        %v415 = vsub.f32 %v258, %v414
        %416 = vmatpush.xpose.msra.mxu0 %v415
        %v417 = vand.u32 %v255, 4294901760
        %v418 = vsub.f32 %v255, %v417
        %419 = vmatpush.xpose.msra.mxu0 %v418
        %v420 = vand.u32 %v252, 4294901760
        %v421 = vsub.f32 %v252, %v420
        %422 = vmatpush.xpose.msra.mxu0 %v421
        %v423 = vand.u32 %v249, 4294901760
        %v424 = vsub.f32 %v249, %v423
        %425 = vmatpush.xpose.msra.mxu0 %v424
        %v426 = vand.u32 %v246, 4294901760
        %v427 = vsub.f32 %v246, %v426
        %428 = vmatpush.xpose.msra.mxu0 %v427
        %v429 = vand.u32 %v243, 4294901760
        %v430 = vsub.f32 %v243, %v429
        %431 = vmatpush.xpose.msra.mxu0 %v430
        %v432 = vand.u32 %v240, 4294901760
        %v433 = vsub.f32 %v240, %v432
        %434 = vmatpush.xpose.msra.mxu0 %v433
        %v435 = vand.u32 %v237, 4294901760
        %v436 = vsub.f32 %v237, %v435
        %437 = vmatpush.xpose.msra.mxu0 %v436
        %v438 = vand.u32 %v234, 4294901760
        %v439 = vsub.f32 %v234, %v438
        %440 = vmatpush.xpose.msra.mxu0 %v439
        %v441 = vand.u32 %v231, 4294901760
        %v442 = vsub.f32 %v231, %v441
        %443 = vmatpush.xpose.msra.mxu0 %v442
        %v444 = vand.u32 %v228, 4294901760
        %v445 = vsub.f32 %v228, %v444
        %446 = vmatpush.xpose.msra.mxu0 %v445
        %v447 = vand.u32 %v225, 4294901760
        %v448 = vsub.f32 %v225, %v447
        %449 = vmatpush.xpose.msra.mxu0 %v448
        %v450 = vand.u32 %v222, 4294901760
        %v451 = vsub.f32 %v222, %v450
        %452 = vmatpush.xpose.msra.mxu0 %v451
        %v453 = vand.u32 %v219, 4294901760
        %v454 = vsub.f32 %v219, %v453
        %455 = vmatpush.xpose.msra.mxu0 %v454
        %v456 = vand.u32 %v216, 4294901760
        %v457 = vsub.f32 %v216, %v456
        %458 = vmatmul.f32.gmra.mxu0 %v457
        %v459 = vpop.f32.mrf.mxu0
        %v460 = vadd.f32 %v406, %v459
        %461 = vdwg.mxu0
        %v462 = vand.u32 %v264, 4294901760
        %463 = vmatpush.xpose.msra.mxu0 %v462
        %v464 = vand.u32 %v261, 4294901760
        %465 = vmatpush.xpose.msra.mxu0 %v464
        %v466 = vand.u32 %v258, 4294901760
        %467 = vmatpush.xpose.msra.mxu0 %v466
        %v468 = vand.u32 %v255, 4294901760
        %469 = vmatpush.xpose.msra.mxu0 %v468
        %v470 = vand.u32 %v252, 4294901760
        %471 = vmatpush.xpose.msra.mxu0 %v470
        %v472 = vand.u32 %v249, 4294901760
        %473 = vmatpush.xpose.msra.mxu0 %v472
        %v474 = vand.u32 %v246, 4294901760
        %475 = vmatpush.xpose.msra.mxu0 %v474
        %v476 = vand.u32 %v243, 4294901760
        %477 = vmatpush.xpose.msra.mxu0 %v476
        %v478 = vand.u32 %v240, 4294901760
        %479 = vmatpush.xpose.msra.mxu0 %v478
        %v480 = vand.u32 %v237, 4294901760
        %481 = vmatpush.xpose.msra.mxu0 %v480
        %v482 = vand.u32 %v234, 4294901760
        %483 = vmatpush.xpose.msra.mxu0 %v482
        %v484 = vand.u32 %v231, 4294901760
        %485 = vmatpush.xpose.msra.mxu0 %v484
        %v486 = vand.u32 %v228, 4294901760
        %487 = vmatpush.xpose.msra.mxu0 %v486
        %v488 = vand.u32 %v225, 4294901760
        %489 = vmatpush.xpose.msra.mxu0 %v488
        %v490 = vand.u32 %v222, 4294901760
        %491 = vmatpush.xpose.msra.mxu0 %v490
        %v492 = vand.u32 %v219, 4294901760
        %493 = vmatpush.xpose.msra.mxu0 %v492
        %v494 = vand.u32 %v216, 4294901760
        %v495 = vsub.f32 %v216, %v494
        %v496 = vand.u32 %v495, 4294901760
        %497 = vmatmul.f32.gmra.mxu0 %v496
        %v498 = vpop.f32.mrf.mxu0
        %v499 = vadd.f32 %v460, %v498
        %500 = vdwg.mxu0
        %v501 = vand.u32 %v264, 4294901760
        %v502 = vsub.f32 %v264, %v501
        %v503 = vand.u32 %v502, 4294901760
        %504 = vmatpush.xpose.msra.mxu0 %v503
        %v505 = vand.u32 %v261, 4294901760
        %v506 = vsub.f32 %v261, %v505
        %v507 = vand.u32 %v506, 4294901760
        %508 = vmatpush.xpose.msra.mxu0 %v507
        %v509 = vand.u32 %v258, 4294901760
        %v510 = vsub.f32 %v258, %v509
        %v511 = vand.u32 %v510, 4294901760
        %512 = vmatpush.xpose.msra.mxu0 %v511
        %v513 = vand.u32 %v255, 4294901760
        %v514 = vsub.f32 %v255, %v513
        %v515 = vand.u32 %v514, 4294901760
        %516 = vmatpush.xpose.msra.mxu0 %v515
        %v517 = vand.u32 %v252, 4294901760
        %v518 = vsub.f32 %v252, %v517
        %v519 = vand.u32 %v518, 4294901760
        %520 = vmatpush.xpose.msra.mxu0 %v519
        %v521 = vand.u32 %v249, 4294901760
        %v522 = vsub.f32 %v249, %v521
        %v523 = vand.u32 %v522, 4294901760
        %524 = vmatpush.xpose.msra.mxu0 %v523
        %v525 = vand.u32 %v246, 4294901760
        %v526 = vsub.f32 %v246, %v525
        %v527 = vand.u32 %v526, 4294901760
        %528 = vmatpush.xpose.msra.mxu0 %v527
        %v529 = vand.u32 %v243, 4294901760
        %v530 = vsub.f32 %v243, %v529
        %v531 = vand.u32 %v530, 4294901760
        %532 = vmatpush.xpose.msra.mxu0 %v531
        %v533 = vand.u32 %v240, 4294901760
        %v534 = vsub.f32 %v240, %v533
        %v535 = vand.u32 %v534, 4294901760
        %536 = vmatpush.xpose.msra.mxu0 %v535
        %v537 = vand.u32 %v237, 4294901760
        %v538 = vsub.f32 %v237, %v537
        %v539 = vand.u32 %v538, 4294901760
        %540 = vmatpush.xpose.msra.mxu0 %v539
        %v541 = vand.u32 %v234, 4294901760
        %v542 = vsub.f32 %v234, %v541
        %v543 = vand.u32 %v542, 4294901760
        %544 = vmatpush.xpose.msra.mxu0 %v543
        %v545 = vand.u32 %v231, 4294901760
        %v546 = vsub.f32 %v231, %v545
        %v547 = vand.u32 %v546, 4294901760
        %548 = vmatpush.xpose.msra.mxu0 %v547
        %v549 = vand.u32 %v228, 4294901760
        %v550 = vsub.f32 %v228, %v549
        %v551 = vand.u32 %v550, 4294901760
        %552 = vmatpush.xpose.msra.mxu0 %v551
        %v553 = vand.u32 %v225, 4294901760
        %v554 = vsub.f32 %v225, %v553
        %v555 = vand.u32 %v554, 4294901760
        %556 = vmatpush.xpose.msra.mxu0 %v555
        %v557 = vand.u32 %v222, 4294901760
        %v558 = vsub.f32 %v222, %v557
        %v559 = vand.u32 %v558, 4294901760
        %560 = vmatpush.xpose.msra.mxu0 %v559
        %v561 = vand.u32 %v219, 4294901760
        %v562 = vsub.f32 %v219, %v561
        %v563 = vand.u32 %v562, 4294901760
        %564 = vmatpush.xpose.msra.mxu0 %v563
        %v565 = vand.u32 %v216, 4294901760
        %566 = vmatmul.f32.gmra.mxu0 %v565
        %v567 = vpop.f32.mrf.mxu0
        %v568 = vadd.f32 %v499, %v567
        %569 = vdwg.mxu0
        %v570 = vand.u32 %v264, 4294901760
        %571 = vmatpush.xpose.msra.mxu0 %v570
        %v572 = vand.u32 %v261, 4294901760
        %573 = vmatpush.xpose.msra.mxu0 %v572
        %v574 = vand.u32 %v258, 4294901760
        %575 = vmatpush.xpose.msra.mxu0 %v574
        %v576 = vand.u32 %v255, 4294901760
        %577 = vmatpush.xpose.msra.mxu0 %v576
        %v578 = vand.u32 %v252, 4294901760
        %579 = vmatpush.xpose.msra.mxu0 %v578
        %v580 = vand.u32 %v249, 4294901760
        %581 = vmatpush.xpose.msra.mxu0 %v580
        %v582 = vand.u32 %v246, 4294901760
        %583 = vmatpush.xpose.msra.mxu0 %v582
        %v584 = vand.u32 %v243, 4294901760
        %585 = vmatpush.xpose.msra.mxu0 %v584
        %v586 = vand.u32 %v240, 4294901760
        %587 = vmatpush.xpose.msra.mxu0 %v586
        %v588 = vand.u32 %v237, 4294901760
        %589 = vmatpush.xpose.msra.mxu0 %v588
        %v590 = vand.u32 %v234, 4294901760
        %591 = vmatpush.xpose.msra.mxu0 %v590
        %v592 = vand.u32 %v231, 4294901760
        %593 = vmatpush.xpose.msra.mxu0 %v592
        %v594 = vand.u32 %v228, 4294901760
        %595 = vmatpush.xpose.msra.mxu0 %v594
        %v596 = vand.u32 %v225, 4294901760
        %597 = vmatpush.xpose.msra.mxu0 %v596
        %v598 = vand.u32 %v222, 4294901760
        %599 = vmatpush.xpose.msra.mxu0 %v598
        %v600 = vand.u32 %v219, 4294901760
        %601 = vmatpush.xpose.msra.mxu0 %v600
        %v602 = vand.u32 %v216, 4294901760
        %603 = vmatmul.f32.gmra.mxu0 %v602
        %v604 = vpop.f32.mrf.mxu0
        %v605 = vadd.f32 %v568, %v604
        %606 = vdwg.mxu0
        %v607 = vmul.f32 %v605, 1.442695
        %v608 = vpow.pop %v607
        %v609 = vld [vmem:[%s3] sm:$0xff]
        %v610 = vld [vmem:[%s3 + $0x8] sm:$0xff]
        %v611 = vld [vmem:[%s3 + $0x10] sm:$0xff]
        %v612 = vld [vmem:[%s3 + $0x18] sm:$0xff]
        %v613 = vld [vmem:[%s3 + $0x20] sm:$0xff]
        %v614 = vld [vmem:[%s3 + $0x28] sm:$0xff]
        %v615 = vld [vmem:[%s3 + $0x30] sm:$0xff]
        %v616 = vld [vmem:[%s3 + $0x38] sm:$0xff]
        %v617 = vld [vmem:[%s3 + $0x40] sm:$0xff]
        %v618 = vld [vmem:[%s3 + $0x48] sm:$0xff]
        %v619 = vld [vmem:[%s3 + $0x50] sm:$0xff]
        %v620 = vld [vmem:[%s3 + $0x58] sm:$0xff]
        %v621 = vld [vmem:[%s3 + $0x60] sm:$0xff]
        %v622 = vld [vmem:[%s3 + $0x68] sm:$0xff]
        %v623 = vld [vmem:[%s3 + $0x70] sm:$0xff]
        %v624 = vld [vmem:[%s3 + $0x78] sm:$0xff]
        %v625 = vlaneseq
        %v626 = vand.u32 %v625, 127
        %vm627 = vcmp.ge.s32.totalorder %v626, 64
        %v628 = vsel %vm627, %v605, 0.0
        %v629 = vand.u32 %v624, 4294901760
        %630 = vmatpush.msra.mxu0 %v629
        %v631 = vand.u32 %v623, 4294901760
        %632 = vmatpush.msra.mxu0 %v631
        %v633 = vand.u32 %v622, 4294901760
        %634 = vmatpush.msra.mxu0 %v633
        %v635 = vand.u32 %v621, 4294901760
        %636 = vmatpush.msra.mxu0 %v635
        %v637 = vand.u32 %v620, 4294901760
        %638 = vmatpush.msra.mxu0 %v637
        %v639 = vand.u32 %v619, 4294901760
        %640 = vmatpush.msra.mxu0 %v639
        %v641 = vand.u32 %v618, 4294901760
        %642 = vmatpush.msra.mxu0 %v641
        %v643 = vand.u32 %v617, 4294901760
        %644 = vmatpush.msra.mxu0 %v643
        %v645 = vand.u32 %v616, 4294901760
        %646 = vmatpush.msra.mxu0 %v645
        %v647 = vand.u32 %v615, 4294901760
        %648 = vmatpush.msra.mxu0 %v647
        %v649 = vand.u32 %v614, 4294901760
        %650 = vmatpush.msra.mxu0 %v649
        %v651 = vand.u32 %v613, 4294901760
        %652 = vmatpush.msra.mxu0 %v651
        %v653 = vand.u32 %v612, 4294901760
        %654 = vmatpush.msra.mxu0 %v653
        %v655 = vand.u32 %v611, 4294901760
        %656 = vmatpush.msra.mxu0 %v655
        %v657 = vand.u32 %v610, 4294901760
        %658 = vmatpush.msra.mxu0 %v657
        %v659 = vand.u32 %v609, 4294901760
        %660 = vmatpush.msra.mxu0 %v659
        %v661 = vand.u32 %v608, 4294901760
        %v662 = vsub.f32 %v608, %v661
        %v663 = vand.u32 %v662, 4294901760
        %v664 = vsub.f32 %v662, %v663
        %v665 = vand.u32 %v664, 4294901760
        %666 = vmatmul.f32.gmra.mxu0 %v665
        %v667 = vpop.f32.mrf.mxu0
        %v668 = vadd.f32 %v628, %v667
        %669 = vdwg.mxu0
        %v670 = vand.u32 %v624, 4294901760
        %v671 = vsub.f32 %v624, %v670
        %v672 = vand.u32 %v671, 4294901760
        %v673 = vsub.f32 %v671, %v672
        %v674 = vand.u32 %v673, 4294901760
        %675 = vmatpush.msra.mxu0 %v674
        %v676 = vand.u32 %v623, 4294901760
        %v677 = vsub.f32 %v623, %v676
        %v678 = vand.u32 %v677, 4294901760
        %v679 = vsub.f32 %v677, %v678
        %v680 = vand.u32 %v679, 4294901760
        %681 = vmatpush.msra.mxu0 %v680
        %v682 = vand.u32 %v622, 4294901760
        %v683 = vsub.f32 %v622, %v682
        %v684 = vand.u32 %v683, 4294901760
        %v685 = vsub.f32 %v683, %v684
        %v686 = vand.u32 %v685, 4294901760
        %687 = vmatpush.msra.mxu0 %v686
        %v688 = vand.u32 %v621, 4294901760
        %v689 = vsub.f32 %v621, %v688
        %v690 = vand.u32 %v689, 4294901760
        %v691 = vsub.f32 %v689, %v690
        %v692 = vand.u32 %v691, 4294901760
        %693 = vmatpush.msra.mxu0 %v692
        %v694 = vand.u32 %v620, 4294901760
        %v695 = vsub.f32 %v620, %v694
        %v696 = vand.u32 %v695, 4294901760
        %v697 = vsub.f32 %v695, %v696
        %v698 = vand.u32 %v697, 4294901760
        %699 = vmatpush.msra.mxu0 %v698
        %v700 = vand.u32 %v619, 4294901760
        %v701 = vsub.f32 %v619, %v700
        %v702 = vand.u32 %v701, 4294901760
        %v703 = vsub.f32 %v701, %v702
        %v704 = vand.u32 %v703, 4294901760
        %705 = vmatpush.msra.mxu0 %v704
        %v706 = vand.u32 %v618, 4294901760
        %v707 = vsub.f32 %v618, %v706
        %v708 = vand.u32 %v707, 4294901760
        %v709 = vsub.f32 %v707, %v708
        %v710 = vand.u32 %v709, 4294901760
        %711 = vmatpush.msra.mxu0 %v710
        %v712 = vand.u32 %v617, 4294901760
        %v713 = vsub.f32 %v617, %v712
        %v714 = vand.u32 %v713, 4294901760
        %v715 = vsub.f32 %v713, %v714
        %v716 = vand.u32 %v715, 4294901760
        %717 = vmatpush.msra.mxu0 %v716
        %v718 = vand.u32 %v616, 4294901760
        %v719 = vsub.f32 %v616, %v718
        %v720 = vand.u32 %v719, 4294901760
        %v721 = vsub.f32 %v719, %v720
        %v722 = vand.u32 %v721, 4294901760
        %723 = vmatpush.msra.mxu0 %v722
        %v724 = vand.u32 %v615, 4294901760
        %v725 = vsub.f32 %v615, %v724
        %v726 = vand.u32 %v725, 4294901760
        %v727 = vsub.f32 %v725, %v726
        %v728 = vand.u32 %v727, 4294901760
        %729 = vmatpush.msra.mxu0 %v728
        %v730 = vand.u32 %v614, 4294901760
        %v731 = vsub.f32 %v614, %v730
        %v732 = vand.u32 %v731, 4294901760
        %v733 = vsub.f32 %v731, %v732
        %v734 = vand.u32 %v733, 4294901760
        %735 = vmatpush.msra.mxu0 %v734
        %v736 = vand.u32 %v613, 4294901760
        %v737 = vsub.f32 %v613, %v736
        %v738 = vand.u32 %v737, 4294901760
        %v739 = vsub.f32 %v737, %v738
        %v740 = vand.u32 %v739, 4294901760
        %741 = vmatpush.msra.mxu0 %v740
        %v742 = vand.u32 %v612, 4294901760
        %v743 = vsub.f32 %v612, %v742
        %v744 = vand.u32 %v743, 4294901760
        %v745 = vsub.f32 %v743, %v744
        %v746 = vand.u32 %v745, 4294901760
        %747 = vmatpush.msra.mxu0 %v746
        %v748 = vand.u32 %v611, 4294901760
        %v749 = vsub.f32 %v611, %v748
        %v750 = vand.u32 %v749, 4294901760
        %v751 = vsub.f32 %v749, %v750
        %v752 = vand.u32 %v751, 4294901760
        %753 = vmatpush.msra.mxu0 %v752
        %v754 = vand.u32 %v610, 4294901760
        %v755 = vsub.f32 %v610, %v754
        %v756 = vand.u32 %v755, 4294901760
        %v757 = vsub.f32 %v755, %v756
        %v758 = vand.u32 %v757, 4294901760
        %759 = vmatpush.msra.mxu0 %v758
        %v760 = vand.u32 %v609, 4294901760
        %v761 = vsub.f32 %v609, %v760
        %v762 = vand.u32 %v761, 4294901760
        %v763 = vsub.f32 %v761, %v762
        %v764 = vand.u32 %v763, 4294901760
        %765 = vmatpush.msra.mxu0 %v764
        %v766 = vand.u32 %v608, 4294901760
        %767 = vmatmul.f32.gmra.mxu0 %v766
        %v768 = vpop.f32.mrf.mxu0
        %v769 = vadd.f32 %v668, %v768
        %770 = vdwg.mxu0
        %v771 = vand.u32 %v624, 4294901760
        %v772 = vsub.f32 %v624, %v771
        %773 = vmatpush.msra.mxu0 %v772
        %v774 = vand.u32 %v623, 4294901760
        %v775 = vsub.f32 %v623, %v774
        %776 = vmatpush.msra.mxu0 %v775
        %v777 = vand.u32 %v622, 4294901760
        %v778 = vsub.f32 %v622, %v777
        %779 = vmatpush.msra.mxu0 %v778
        %v780 = vand.u32 %v621, 4294901760
        %v781 = vsub.f32 %v621, %v780
        %782 = vmatpush.msra.mxu0 %v781
        %v783 = vand.u32 %v620, 4294901760
        %v784 = vsub.f32 %v620, %v783
        %785 = vmatpush.msra.mxu0 %v784
        %v786 = vand.u32 %v619, 4294901760
        %v787 = vsub.f32 %v619, %v786
        %788 = vmatpush.msra.mxu0 %v787
        %v789 = vand.u32 %v618, 4294901760
        %v790 = vsub.f32 %v618, %v789
        %791 = vmatpush.msra.mxu0 %v790
        %v792 = vand.u32 %v617, 4294901760
        %v793 = vsub.f32 %v617, %v792
        %794 = vmatpush.msra.mxu0 %v793
        %v795 = vand.u32 %v616, 4294901760
        %v796 = vsub.f32 %v616, %v795
        %797 = vmatpush.msra.mxu0 %v796
        %v798 = vand.u32 %v615, 4294901760
        %v799 = vsub.f32 %v615, %v798
        %800 = vmatpush.msra.mxu0 %v799
        %v801 = vand.u32 %v614, 4294901760
        %v802 = vsub.f32 %v614, %v801
        %803 = vmatpush.msra.mxu0 %v802
        %v804 = vand.u32 %v613, 4294901760
        %v805 = vsub.f32 %v613, %v804
        %806 = vmatpush.msra.mxu0 %v805
        %v807 = vand.u32 %v612, 4294901760
        %v808 = vsub.f32 %v612, %v807
        %809 = vmatpush.msra.mxu0 %v808
        %v810 = vand.u32 %v611, 4294901760
        %v811 = vsub.f32 %v611, %v810
        %812 = vmatpush.msra.mxu0 %v811
        %v813 = vand.u32 %v610, 4294901760
        %v814 = vsub.f32 %v610, %v813
        %815 = vmatpush.msra.mxu0 %v814
        %v816 = vand.u32 %v609, 4294901760
        %v817 = vsub.f32 %v609, %v816
        %818 = vmatpush.msra.mxu0 %v817
        %v819 = vand.u32 %v608, 4294901760
        %v820 = vsub.f32 %v608, %v819
        %821 = vmatmul.f32.gmra.mxu0 %v820
        %v822 = vpop.f32.mrf.mxu0
        %v823 = vadd.f32 %v769, %v822
        %824 = vdwg.mxu0
        %v825 = vand.u32 %v624, 4294901760
        %826 = vmatpush.msra.mxu0 %v825
        %v827 = vand.u32 %v623, 4294901760
        %828 = vmatpush.msra.mxu0 %v827
        %v829 = vand.u32 %v622, 4294901760
        %830 = vmatpush.msra.mxu0 %v829
        %v831 = vand.u32 %v621, 4294901760
        %832 = vmatpush.msra.mxu0 %v831
        %v833 = vand.u32 %v620, 4294901760
        %834 = vmatpush.msra.mxu0 %v833
        %v835 = vand.u32 %v619, 4294901760
        %836 = vmatpush.msra.mxu0 %v835
        %v837 = vand.u32 %v618, 4294901760
        %838 = vmatpush.msra.mxu0 %v837
        %v839 = vand.u32 %v617, 4294901760
        %840 = vmatpush.msra.mxu0 %v839
        %v841 = vand.u32 %v616, 4294901760
        %842 = vmatpush.msra.mxu0 %v841
        %v843 = vand.u32 %v615, 4294901760
        %844 = vmatpush.msra.mxu0 %v843
        %v845 = vand.u32 %v614, 4294901760
        %846 = vmatpush.msra.mxu0 %v845
        %v847 = vand.u32 %v613, 4294901760
        %848 = vmatpush.msra.mxu0 %v847
        %v849 = vand.u32 %v612, 4294901760
        %850 = vmatpush.msra.mxu0 %v849
        %v851 = vand.u32 %v611, 4294901760
        %852 = vmatpush.msra.mxu0 %v851
        %v853 = vand.u32 %v610, 4294901760
        %854 = vmatpush.msra.mxu0 %v853
        %v855 = vand.u32 %v609, 4294901760
        %856 = vmatpush.msra.mxu0 %v855
        %v857 = vand.u32 %v608, 4294901760
        %v858 = vsub.f32 %v608, %v857
        %v859 = vand.u32 %v858, 4294901760
        %860 = vmatmul.f32.gmra.mxu0 %v859
        %v861 = vpop.f32.mrf.mxu0
        %v862 = vadd.f32 %v823, %v861
        %863 = vdwg.mxu0
        %v864 = vand.u32 %v624, 4294901760
        %v865 = vsub.f32 %v624, %v864
        %v866 = vand.u32 %v865, 4294901760
        %867 = vmatpush.msra.mxu0 %v866
        %v868 = vand.u32 %v623, 4294901760
        %v869 = vsub.f32 %v623, %v868
        %v870 = vand.u32 %v869, 4294901760
        %871 = vmatpush.msra.mxu0 %v870
        %v872 = vand.u32 %v622, 4294901760
        %v873 = vsub.f32 %v622, %v872
        %v874 = vand.u32 %v873, 4294901760
        %875 = vmatpush.msra.mxu0 %v874
        %v876 = vand.u32 %v621, 4294901760
        %v877 = vsub.f32 %v621, %v876
        %v878 = vand.u32 %v877, 4294901760
        %879 = vmatpush.msra.mxu0 %v878
        %v880 = vand.u32 %v620, 4294901760
        %v881 = vsub.f32 %v620, %v880
        %v882 = vand.u32 %v881, 4294901760
        %883 = vmatpush.msra.mxu0 %v882
        %v884 = vand.u32 %v619, 4294901760
        %v885 = vsub.f32 %v619, %v884
        %v886 = vand.u32 %v885, 4294901760
        %887 = vmatpush.msra.mxu0 %v886
        %v888 = vand.u32 %v618, 4294901760
        %v889 = vsub.f32 %v618, %v888
        %v890 = vand.u32 %v889, 4294901760
        %891 = vmatpush.msra.mxu0 %v890
        %v892 = vand.u32 %v617, 4294901760
        %v893 = vsub.f32 %v617, %v892
        %v894 = vand.u32 %v893, 4294901760
        %895 = vmatpush.msra.mxu0 %v894
        %v896 = vand.u32 %v616, 4294901760
        %v897 = vsub.f32 %v616, %v896
        %v898 = vand.u32 %v897, 4294901760
        %899 = vmatpush.msra.mxu0 %v898
        %v900 = vand.u32 %v615, 4294901760
        %v901 = vsub.f32 %v615, %v900
        %v902 = vand.u32 %v901, 4294901760
        %903 = vmatpush.msra.mxu0 %v902
        %v904 = vand.u32 %v614, 4294901760
        %v905 = vsub.f32 %v614, %v904
        %v906 = vand.u32 %v905, 4294901760
        %907 = vmatpush.msra.mxu0 %v906
        %v908 = vand.u32 %v613, 4294901760
        %v909 = vsub.f32 %v613, %v908
        %v910 = vand.u32 %v909, 4294901760
        %911 = vmatpush.msra.mxu0 %v910
        %v912 = vand.u32 %v612, 4294901760
        %v913 = vsub.f32 %v612, %v912
        %v914 = vand.u32 %v913, 4294901760
        %915 = vmatpush.msra.mxu0 %v914
        %v916 = vand.u32 %v611, 4294901760
        %v917 = vsub.f32 %v611, %v916
        %v918 = vand.u32 %v917, 4294901760
        %919 = vmatpush.msra.mxu0 %v918
        %v920 = vand.u32 %v610, 4294901760
        %v921 = vsub.f32 %v610, %v920
        %v922 = vand.u32 %v921, 4294901760
        %923 = vmatpush.msra.mxu0 %v922
        %v924 = vand.u32 %v609, 4294901760
        %v925 = vsub.f32 %v609, %v924
        %v926 = vand.u32 %v925, 4294901760
        %927 = vmatpush.msra.mxu0 %v926
        %v928 = vand.u32 %v608, 4294901760
        %929 = vmatmul.f32.gmra.mxu0 %v928
        %v930 = vpop.f32.mrf.mxu0
        %v931 = vadd.f32 %v862, %v930
        %932 = vdwg.mxu0
        %v933 = vand.u32 %v624, 4294901760
        %934 = vmatpush.msra.mxu0 %v933
        %v935 = vand.u32 %v623, 4294901760
        %936 = vmatpush.msra.mxu0 %v935
        %v937 = vand.u32 %v622, 4294901760
        %938 = vmatpush.msra.mxu0 %v937
        %v939 = vand.u32 %v621, 4294901760
        %940 = vmatpush.msra.mxu0 %v939
        %v941 = vand.u32 %v620, 4294901760
        %942 = vmatpush.msra.mxu0 %v941
        %v943 = vand.u32 %v619, 4294901760
        %944 = vmatpush.msra.mxu0 %v943
        %v945 = vand.u32 %v618, 4294901760
        %946 = vmatpush.msra.mxu0 %v945
        %v947 = vand.u32 %v617, 4294901760
        %948 = vmatpush.msra.mxu0 %v947
        %v949 = vand.u32 %v616, 4294901760
        %950 = vmatpush.msra.mxu0 %v949
        %v951 = vand.u32 %v615, 4294901760
        %952 = vmatpush.msra.mxu0 %v951
        %v953 = vand.u32 %v614, 4294901760
        %954 = vmatpush.msra.mxu0 %v953
        %v955 = vand.u32 %v613, 4294901760
        %956 = vmatpush.msra.mxu0 %v955
        %v957 = vand.u32 %v612, 4294901760
        %958 = vmatpush.msra.mxu0 %v957
        %v959 = vand.u32 %v611, 4294901760
        %960 = vmatpush.msra.mxu0 %v959
        %v961 = vand.u32 %v610, 4294901760
        %962 = vmatpush.msra.mxu0 %v961
        %v963 = vand.u32 %v609, 4294901760
        %964 = vmatpush.msra.mxu0 %v963
        %v965 = vand.u32 %v608, 4294901760
        %966 = vmatmul.f32.gmra.mxu0 %v965
        %v967 = vpop.f32.mrf.mxu0
        %v968 = vadd.f32 %v931, %v967
        %969 = vdwg.mxu0
        %970 = vst [vmem:[%s188] sm:$0xff] %v968
        %s971 = sand.u32 %s115, 1
        %s972 = scalar_lea.sflag [#allocation3], %s971
        %s973 = sand.u32 %s115, 1
        %s974 = smul.addr %s973, 8
        %s975 = scalar_lea.vmem [#allocation2], %s974
        // Predicated region
        $region37: #{tpu_custom_call.1} parent=35 // pred_check
          %p976 = pneg %p125
        $region38: #{tpu_custom_call.1} parent=35 // pred_check_branch
          %978 = sbr.rel (%p976) target = $region40
        $region39: #{tpu_custom_call.1} parent=35 // pred_region
          %980 = vsyncadd %s972, 0
          %s981 = smul.addr %s18, 8
          %s982 = scalar_lea.hbm %s4, %s981
          %s984 = sshll.u32 %s975, 4
          %s985 = int_to_ptr.vmem [resolvable:$true] %s984
          %s986 = sshll.u32 %s982, 4
          %s987 = int_to_ptr.hbm [resolvable:$true] %s986
          %989 = dma.vmem_to_hbm [thread:$0]  %s985, 128, %s987, %s972
        $region40: #{tpu_custom_call.1} parent=35 // pred_fallthru
          _
      $region36: #{tpu_custom_call.1} parent=5 // pred_fallthru
        _
      %p990 = scmp.le.s32.totalorder 2, %s13
      // Predicated region
      $region41: #{tpu_custom_call.1} parent=5 // pred_check
        %p991 = pneg %p990
      $region42: #{tpu_custom_call.1} parent=5 // pred_check_branch
        %993 = sbr.rel (%p991) target = $region44
      $region43: #{tpu_custom_call.1} parent=5 // pred_region
        %s994 = ssub.s32 %s13, 2
        // Predicated region
        $region45: #{tpu_custom_call.1} parent=43 // pred_check
          %p995 = pneg %p131
        $region46: #{tpu_custom_call.1} parent=43 // pred_check_branch
          %997 = sbr.rel (%p995) target = $region48
        $region47: #{tpu_custom_call.1} parent=43 // pred_region
          %s998 = sand.u32 %s116, 1
          %s999 = scalar_lea.sflag [#allocation3], %s998
          %s1000 = sand.u32 %s116, 1
          %s1001 = smul.addr %s1000, 8
          %s1002 = scalar_lea.vmem [#allocation2], %s1001
          %1004 = dma.done %s999, 128
        $region48: #{tpu_custom_call.1} parent=43 // pred_fallthru
          _
      $region44: #{tpu_custom_call.1} parent=5 // pred_fallthru
        _
    $region6: #{tpu_custom_call.1} parent=1 // loop_footer
      %s17 = sadd.s32 1, %s13
    $region7: #{tpu_custom_call.1} parent=1 // loop_footer_branch
      %12 = sbr.rel target = $region3
    $region8: #{tpu_custom_call.1} parent=1 // loop_exit
      _
    %1005 = vsyncpa [#allocation3], 1
    %s1006 = scalar_lea.sflag [#allocation3], 1
    %1007 = vsyncpa %s1006, 1

</llo_original>
